<compile_context>
chip_gen: v7x
topology: tpu7x:2x2x1
jax: 0.10.0
libtpu: 0.0.40
codegen_flags: <defaults>
</compile_context>

<pallas_src>
import functools

import jax
import jax.numpy as jnp
from jax.experimental import pallas as pl
from jax.experimental.pallas import tpu as pltpu

LN_EPS = 1e-5  # PyTorch nn.LayerNorm default eps


def _round_up(x, m):
    return ((x + m - 1) // m) * m


def _vmem_limit_bytes(*nbytes):
    need = int(sum(nbytes))
    # Generous headroom; cap at 64 MiB (v7x physical VMEM per TensorCore).
    return int(min(max(2 * need + (2 << 20), 16 << 20), 64 << 20))


def _batch_tile(batch, block_rows):
    tm = min(block_rows, _round_up(batch, 8))
    return _round_up(tm, 8)  # f32 sublane tile


def _pad_rows(x, tm):
    b = x.shape[0]
    bp = _round_up(b, tm)
    if bp != b:
        x = jnp.pad(x, ((0, bp - b), (0, 0)))
    return x


# ---------------------------------------------------------------------------
# Fused kernel body: one batch tile runs the entire MLP with weights resident.
# ---------------------------------------------------------------------------
def _fused_mlp_kernel(xc_ref, win_ref, bin_ref, wblk_ref, pblk_ref,
                      wout_ref, bout_ref, o_ref, *, depth: int, use_ln: bool):
    """xc_ref  : (tm, d_in_total)        concat([x, cond]) tile
       win_ref : (d_in_total, hidden)    block-diag packed [x_proj ; cond_proj] weight
       bin_ref : (1, hidden)             packed projection bias
       wblk_ref: (depth, hidden, hidden) residual-block weights (stored transposed)
       pblk_ref: (depth, 3, hidden)      per block: row0 bias, row1 ln gamma, row2 ln beta
       wout_ref: (hidden, d_out)         final linear weight (transposed)
       bout_ref: (1, d_out)              final bias
       o_ref   : (tm, d_out)             output tile
    """
    # Input projection (x_proj + cond_proj + concat fused into one matmul).
    h = jnp.dot(xc_ref[...].astype(win_ref.dtype), win_ref[...],
                preferred_element_type=jnp.float32)
    h = h + bin_ref[...].astype(jnp.float32)

    # Residual blocks — depth is static, unrolled; activations stay in f32 vregs/VMEM.
    for d in range(depth):
        x = h
        if use_ln:
            gamma = pblk_ref[d, 1:2, :].astype(jnp.float32)
            beta = pblk_ref[d, 2:3, :].astype(jnp.float32)
            mean = jnp.mean(x, axis=-1, keepdims=True)
            centered = x - mean
            var = jnp.mean(centered * centered, axis=-1, keepdims=True)
            z = centered * jax.lax.rsqrt(var + LN_EPS) * gamma + beta
        else:
            z = x
        z = jnp.maximum(z, 0.0)
        y = jnp.dot(z.astype(wblk_ref.dtype), wblk_ref[d],
                    preferred_element_type=jnp.float32)
        h = x + y + pblk_ref[d, 0:1, :].astype(jnp.float32)

    # Final activation + linear.
    h = jnp.maximum(h, 0.0)
    out = jnp.dot(h.astype(wout_ref.dtype), wout_ref[...],
                  preferred_element_type=jnp.float32)
    out = out + bout_ref[...].astype(jnp.float32)
    o_ref[...] = out.astype(o_ref.dtype)


# ---------------------------------------------------------------------------
# Full ResidualMLP forward (single pallas_call)
# ---------------------------------------------------------------------------
@functools.partial(jax.jit, static_argnames=("layer_norm", "block_rows"))
def residual_mlp_forward(params, x, cond, *, layer_norm=True, block_rows=256):
    batch = x.shape[0]
    d_x = params["x_proj_w_t"].shape[0]
    d_c = params["cond_proj_w_t"].shape[0]
    width = params["x_proj_w_t"].shape[1]
    hidden = 2 * width
    d_out = params["final_w_t"].shape[1]
    depth = len(params["blocks"])
    w_dtype = params["final_w_t"].dtype

    # Pack the two input projections into one block-diagonal weight so the concat
    # becomes a single matmul: cat(xWx+bx, cWc+bc) == [x,c] @ blockdiag(Wx,Wc) + [bx,bc].
    d_in_total = d_x + d_c
    w_in = jnp.zeros((d_in_total, hidden), dtype=w_dtype)
    w_in = w_in.at[:d_x, :width].set(params["x_proj_w_t"])
    w_in = w_in.at[d_x:, width:].set(params["cond_proj_w_t"])
    b_in = jnp.concatenate([params["x_proj_b"], params["cond_proj_b"]]).reshape(1, hidden)

    if depth > 0:
        w_blk = jnp.stack([w for w, _ in params["blocks"]], axis=0)   # (depth, hidden, hidden)
        p_blk = jnp.stack([p for _, p in params["blocks"]], axis=0)   # (depth, 3, hidden)
    else:  # keep operand shapes valid; kernel ignores them when depth == 0
        w_blk = jnp.zeros((1, hidden, hidden), dtype=w_dtype)
        p_blk = jnp.zeros((1, 3, hidden), dtype=w_dtype)
    n_blk = w_blk.shape[0]

    b_out = params["final_b"].reshape(1, d_out)

    xc = jnp.concatenate([x, cond], axis=-1)          # (B, d_in_total), plain-JAX preprocessing
    tm = _batch_tile(batch, block_rows)
    xcp = _pad_rows(xc, tm)
    bp = xcp.shape[0]

    wb = jnp.dtype(w_dtype).itemsize
    weight_bytes = (d_in_total * hidden + n_blk * hidden * hidden
                    + n_blk * 3 * hidden + hidden * d_out + hidden + d_out) * wb
    vmem = _vmem_limit_bytes(
        2 * tm * d_in_total * 4,       # double-buffered input tiles
        2 * tm * d_out * 4,            # double-buffered output tiles
        2 * weight_bytes,              # (invariant) weight buffers
        8 * tm * hidden * 4)           # f32 activation temporaries
    cost = pl.CostEstimate(
        flops=2 * bp * (d_in_total * hidden + depth * hidden * hidden + hidden * d_out)
              + 10 * bp * hidden * max(depth, 1),
        transcendentals=bp * depth if layer_norm else 0,
        bytes_accessed=4 * bp * (d_in_total + d_out) + weight_bytes)

    out = pl.pallas_call(
        functools.partial(_fused_mlp_kernel, depth=depth, use_ln=layer_norm),
        out_shape=jax.ShapeDtypeStruct((bp, d_out), x.dtype),
        grid_spec=pltpu.PrefetchScalarGridSpec(
            num_scalar_prefetch=0,
            grid=(bp // tm,),
            in_specs=[
                pl.BlockSpec((tm, d_in_total), lambda i: (i, 0)),          # xc tile
                pl.BlockSpec((d_in_total, hidden), lambda i: (0, 0)),       # packed proj weight
                pl.BlockSpec((1, hidden), lambda i: (0, 0)),                # packed proj bias
                pl.BlockSpec((n_blk, hidden, hidden), lambda i: (0, 0, 0)), # block weights
                pl.BlockSpec((n_blk, 3, hidden), lambda i: (0, 0, 0)),      # block b/gamma/beta
                pl.BlockSpec((hidden, d_out), lambda i: (0, 0)),            # final weight
                pl.BlockSpec((1, d_out), lambda i: (0, 0)),                 # final bias
            ],
            out_specs=pl.BlockSpec((tm, d_out), lambda i: (i, 0)),
        ),
        compiler_params=pltpu.CompilerParams(
            dimension_semantics=("parallel",),
            vmem_limit_bytes=vmem),
        cost_estimate=cost,
    )(xcp, w_in, b_in, w_blk, p_blk, params["final_w_t"], b_out)
    return out[:batch]


# ---------------------------------------------------------------------------
# Pure-JAX reference mirroring the PyTorch forward
# ---------------------------------------------------------------------------
def residual_mlp_ref(params, x, cond, *, layer_norm=True):
    h = x @ params["x_proj_w_t"] + params["x_proj_b"]
    c = cond @ params["cond_proj_w_t"] + params["cond_proj_b"]
    h = jnp.concatenate([h, c], axis=-1)
    for w_t, packed in params["blocks"]:
        bias, gamma, beta = packed[0], packed[1], packed[2]
        z = h
        if layer_norm:
            mean = jnp.mean(z, axis=-1, keepdims=True)
            var = jnp.mean((z - mean) ** 2, axis=-1, keepdims=True)
            z = (z - mean) / jnp.sqrt(var + LN_EPS) * gamma + beta
        z = jnp.maximum(z, 0.0)
        h = h + z @ w_t + bias
    h = jnp.maximum(h, 0.0)
    return h @ params["final_w_t"] + params["final_b"]


def _init_linear(key, d_in, d_out, dtype=jnp.float32):
    """PyTorch nn.Linear-style uniform init; weight stored transposed (d_in, d_out)."""
    kw, kb = jax.random.split(key)
    bound = 1.0 / (d_in ** 0.5)
    w = jax.random.uniform(kw, (d_out, d_in), minval=-bound, maxval=bound, dtype=dtype)
    b = jax.random.uniform(kb, (d_out,), minval=-bound, maxval=bound, dtype=dtype)
    return w.T, b


if __name__ == "__main__":
    # Small ResidualMLP: input_dim=16, cond_dim=8, width=64 (hidden = 2*width = 128,
    # lane-dense), depth=2, output_dim=16, layer_norm=True, relu activation.
    batch = 16
    input_dim, cond_dim, width, depth, output_dim = 16, 8, 64, 2, 16
    hidden = 2 * width
    layer_norm = True

    key = jax.random.PRNGKey(0)
    keys = jax.random.split(key, 5 + depth)

    x = jax.random.normal(keys[0], (batch, input_dim), dtype=jnp.float32)
    cond = jax.random.normal(keys[1], (batch, cond_dim), dtype=jnp.float32)

    xw, xb = _init_linear(keys[2], input_dim, width)
    cw, cb = _init_linear(keys[3], cond_dim, width)
    fw, fb = _init_linear(keys[4], hidden, output_dim)

    blocks = []
    for d in range(depth):
        bw, bb = _init_linear(keys[5 + d], hidden, hidden)
        gamma = jnp.ones((hidden,), dtype=jnp.float32)   # nn.LayerNorm init
        beta = jnp.zeros((hidden,), dtype=jnp.float32)
        packed = jnp.stack([bb, gamma, beta], axis=0)     # (3, hidden)
        blocks.append((bw, packed))

    params = {
        "x_proj_w_t": xw, "x_proj_b": xb,
        "cond_proj_w_t": cw, "cond_proj_b": cb,
        "final_w_t": fw, "final_b": fb,
        "blocks": blocks,
    }

    out = residual_mlp_forward(params, x, cond, layer_norm=layer_norm, block_rows=256)
    out = jax.block_until_ready(out)

    ref = residual_mlp_ref(params, x, cond, layer_norm=layer_norm)
    assert out.shape == (batch, output_dim)
    assert jnp.allclose(out, ref, atol=1e-4, rtol=1e-4), "mismatch vs reference"

    print("KERNEL_OK")
</pallas_src>

<mosaic_0001>
module attributes {stable_mosaic.version = 11 : i64} {
  func.func @_fused_mlp_kernel(%arg0: i32, %arg1: memref<16x24xf32, #tpu.memory_space<vmem>>, %arg2: memref<24x128xf32, #tpu.memory_space<vmem>>, %arg3: memref<1x128xf32, #tpu.memory_space<vmem>>, %arg4: memref<2x128x128xf32, #tpu.memory_space<vmem>>, %arg5: memref<2x3x128xf32, #tpu.memory_space<vmem>>, %arg6: memref<128x16xf32, #tpu.memory_space<vmem>>, %arg7: memref<1x16xf32, #tpu.memory_space<vmem>>, %arg8: memref<16x16xf32, #tpu.memory_space<vmem>>) attributes {dimension_semantics = [#tpu.dimension_semantics<parallel>], iteration_bounds = array<i64: 1>, scalar_prefetch = 0 : i64, scratch_operands = 0 : i64, tpu.core_type = #tpu.core_type<tc>, window_params = [{transform_indices = @transform_0, window_bounds = array<i64: 16, 24>}, {pipeline_mode = #tpu.pipeline_mode<synchronous>, transform_indices = @transform_1, window_bounds = array<i64: 24, 128>}, {pipeline_mode = #tpu.pipeline_mode<synchronous>, transform_indices = @transform_2, window_bounds = array<i64: 1, 128>}, {pipeline_mode = #tpu.pipeline_mode<synchronous>, transform_indices = @transform_3, window_bounds = array<i64: 2, 128, 128>}, {pipeline_mode = #tpu.pipeline_mode<synchronous>, transform_indices = @transform_4, window_bounds = array<i64: 2, 3, 128>}, {pipeline_mode = #tpu.pipeline_mode<synchronous>, transform_indices = @transform_5, window_bounds = array<i64: 128, 16>}, {pipeline_mode = #tpu.pipeline_mode<synchronous>, transform_indices = @transform_6, window_bounds = array<i64: 1, 16>}, {transform_indices = @transform_7, window_bounds = array<i64: 16, 16>}]} {
    %c0 = arith.constant 0 : index
    %c0_0 = arith.constant 0 : index
    %0 = vector.load %arg1[%c0, %c0_0] : memref<16x24xf32, #tpu.memory_space<vmem>>, vector<16x24xf32>
    %c0_1 = arith.constant 0 : index
    %c0_2 = arith.constant 0 : index
    %1 = vector.load %arg2[%c0_1, %c0_2] : memref<24x128xf32, #tpu.memory_space<vmem>>, vector<24x128xf32>
    %cst = arith.constant dense<0.000000e+00> : vector<16x128xf32>
    %2 = tpu.matmul %0, %1, %cst {dimension_numbers = #tpu.dot_dimension_numbers<[1], [0], [0], [1], [0, 0, 1, 1], [], []>} : vector<16x24xf32>, vector<24x128xf32>, vector<16x128xf32> -> vector<16x128xf32>
    %c0_3 = arith.constant 0 : index
    %c0_4 = arith.constant 0 : index
    %3 = vector.load %arg3[%c0_3, %c0_4] : memref<1x128xf32, #tpu.memory_space<vmem>>, vector<1x128xf32>
    %4 = vector.broadcast %3 : vector<1x128xf32> to vector<16x128xf32>
    %5 = arith.addf %2, %4 : vector<16x128xf32>
    %c0_5 = arith.constant 0 : index
    %c1 = arith.constant 1 : index
    %c0_6 = arith.constant 0 : index
    %6 = vector.load %arg5[%c0_5, %c1, %c0_6] : memref<2x3x128xf32, #tpu.memory_space<vmem>>, vector<1x1x128xf32>
    %7 = vector.shape_cast %6 : vector<1x1x128xf32> to vector<1x128xf32>
    %c0_7 = arith.constant 0 : index
    %c2 = arith.constant 2 : index
    %c0_8 = arith.constant 0 : index
    %8 = vector.load %arg5[%c0_7, %c2, %c0_8] : memref<2x3x128xf32, #tpu.memory_space<vmem>>, vector<1x1x128xf32>
    %9 = vector.shape_cast %8 : vector<1x1x128xf32> to vector<1x128xf32>
    %cst_9 = arith.constant dense<0.000000e+00> : vector<16xf32>
    %10 = vector.multi_reduction <add>, %5, %cst_9 [1] : vector<16x128xf32> to vector<16xf32>
    %11 = vector.shape_cast %10 : vector<16xf32> to vector<16x1xf32>
    %cst_10 = arith.constant 1.280000e+02 : f32
    %12 = vector.broadcast %cst_10 : f32 to vector<16x1xf32>
    %13 = arith.divf %11, %12 : vector<16x1xf32>
    %14 = vector.broadcast %13 : vector<16x1xf32> to vector<16x128xf32>
    %15 = arith.subf %5, %14 : vector<16x128xf32>
    %16 = arith.mulf %15, %15 : vector<16x128xf32>
    %cst_11 = arith.constant dense<0.000000e+00> : vector<16xf32>
    %17 = vector.multi_reduction <add>, %16, %cst_11 [1] : vector<16x128xf32> to vector<16xf32>
    %18 = vector.shape_cast %17 : vector<16xf32> to vector<16x1xf32>
    %cst_12 = arith.constant 1.280000e+02 : f32
    %19 = vector.broadcast %cst_12 : f32 to vector<16x1xf32>
    %20 = arith.divf %18, %19 : vector<16x1xf32>
    %cst_13 = arith.constant 9.99999974E-6 : f32
    %21 = vector.broadcast %cst_13 : f32 to vector<16x1xf32>
    %22 = arith.addf %20, %21 : vector<16x1xf32>
    %23 = math.rsqrt %22 : vector<16x1xf32>
    %24 = vector.broadcast %23 : vector<16x1xf32> to vector<16x128xf32>
    %25 = arith.mulf %15, %24 : vector<16x128xf32>
    %26 = vector.broadcast %7 : vector<1x128xf32> to vector<16x128xf32>
    %27 = arith.mulf %25, %26 : vector<16x128xf32>
    %28 = vector.broadcast %9 : vector<1x128xf32> to vector<16x128xf32>
    %29 = arith.addf %27, %28 : vector<16x128xf32>
    %cst_14 = arith.constant 0.000000e+00 : f32
    %30 = vector.broadcast %cst_14 : f32 to vector<16x128xf32>
    %31 = arith.maximumf %29, %30 : vector<16x128xf32>
    %c0_15 = arith.constant 0 : index
    %c0_16 = arith.constant 0 : index
    %c0_17 = arith.constant 0 : index
    %32 = vector.load %arg4[%c0_15, %c0_16, %c0_17] : memref<2x128x128xf32, #tpu.memory_space<vmem>>, vector<1x128x128xf32>
    %33 = vector.shape_cast %32 : vector<1x128x128xf32> to vector<128x128xf32>
    %cst_18 = arith.constant dense<0.000000e+00> : vector<16x128xf32>
    %34 = tpu.matmul %31, %33, %cst_18 {dimension_numbers = #tpu.dot_dimension_numbers<[1], [0], [0], [1], [0, 0, 1, 1], [], []>} : vector<16x128xf32>, vector<128x128xf32>, vector<16x128xf32> -> vector<16x128xf32>
    %35 = arith.addf %5, %34 : vector<16x128xf32>
    %c0_19 = arith.constant 0 : index
    %c0_20 = arith.constant 0 : index
    %c0_21 = arith.constant 0 : index
    %36 = vector.load %arg5[%c0_19, %c0_20, %c0_21] : memref<2x3x128xf32, #tpu.memory_space<vmem>>, vector<1x1x128xf32>
    %37 = vector.shape_cast %36 : vector<1x1x128xf32> to vector<1x128xf32>
    %38 = vector.broadcast %37 : vector<1x128xf32> to vector<16x128xf32>
    %39 = arith.addf %35, %38 : vector<16x128xf32>
    %c1_22 = arith.constant 1 : index
    %c1_23 = arith.constant 1 : index
    %c0_24 = arith.constant 0 : index
    %40 = vector.load %arg5[%c1_22, %c1_23, %c0_24] : memref<2x3x128xf32, #tpu.memory_space<vmem>>, vector<1x1x128xf32>
    %41 = vector.shape_cast %40 : vector<1x1x128xf32> to vector<1x128xf32>
    %c1_25 = arith.constant 1 : index
    %c2_26 = arith.constant 2 : index
    %c0_27 = arith.constant 0 : index
    %42 = vector.load %arg5[%c1_25, %c2_26, %c0_27] : memref<2x3x128xf32, #tpu.memory_space<vmem>>, vector<1x1x128xf32>
    %43 = vector.shape_cast %42 : vector<1x1x128xf32> to vector<1x128xf32>
    %cst_28 = arith.constant dense<0.000000e+00> : vector<16xf32>
    %44 = vector.multi_reduction <add>, %39, %cst_28 [1] : vector<16x128xf32> to vector<16xf32>
    %45 = vector.shape_cast %44 : vector<16xf32> to vector<16x1xf32>
    %cst_29 = arith.constant 1.280000e+02 : f32
    %46 = vector.broadcast %cst_29 : f32 to vector<16x1xf32>
    %47 = arith.divf %45, %46 : vector<16x1xf32>
    %48 = vector.broadcast %47 : vector<16x1xf32> to vector<16x128xf32>
    %49 = arith.subf %39, %48 : vector<16x128xf32>
    %50 = arith.mulf %49, %49 : vector<16x128xf32>
    %cst_30 = arith.constant dense<0.000000e+00> : vector<16xf32>
    %51 = vector.multi_reduction <add>, %50, %cst_30 [1] : vector<16x128xf32> to vector<16xf32>
    %52 = vector.shape_cast %51 : vector<16xf32> to vector<16x1xf32>
    %cst_31 = arith.constant 1.280000e+02 : f32
    %53 = vector.broadcast %cst_31 : f32 to vector<16x1xf32>
    %54 = arith.divf %52, %53 : vector<16x1xf32>
    %cst_32 = arith.constant 9.99999974E-6 : f32
    %55 = vector.broadcast %cst_32 : f32 to vector<16x1xf32>
    %56 = arith.addf %54, %55 : vector<16x1xf32>
    %57 = math.rsqrt %56 : vector<16x1xf32>
    %58 = vector.broadcast %57 : vector<16x1xf32> to vector<16x128xf32>
    %59 = arith.mulf %49, %58 : vector<16x128xf32>
    %60 = vector.broadcast %41 : vector<1x128xf32> to vector<16x128xf32>
    %61 = arith.mulf %59, %60 : vector<16x128xf32>
    %62 = vector.broadcast %43 : vector<1x128xf32> to vector<16x128xf32>
    %63 = arith.addf %61, %62 : vector<16x128xf32>
    %cst_33 = arith.constant 0.000000e+00 : f32
    %64 = vector.broadcast %cst_33 : f32 to vector<16x128xf32>
    %65 = arith.maximumf %63, %64 : vector<16x128xf32>
    %c1_34 = arith.constant 1 : index
    %c0_35 = arith.constant 0 : index
    %c0_36 = arith.constant 0 : index
    %66 = vector.load %arg4[%c1_34, %c0_35, %c0_36] : memref<2x128x128xf32, #tpu.memory_space<vmem>>, vector<1x128x128xf32>
    %67 = vector.shape_cast %66 : vector<1x128x128xf32> to vector<128x128xf32>
    %cst_37 = arith.constant dense<0.000000e+00> : vector<16x128xf32>
    %68 = tpu.matmul %65, %67, %cst_37 {dimension_numbers = #tpu.dot_dimension_numbers<[1], [0], [0], [1], [0, 0, 1, 1], [], []>} : vector<16x128xf32>, vector<128x128xf32>, vector<16x128xf32> -> vector<16x128xf32>
    %69 = arith.addf %39, %68 : vector<16x128xf32>
    %c1_38 = arith.constant 1 : index
    %c0_39 = arith.constant 0 : index
    %c0_40 = arith.constant 0 : index
    %70 = vector.load %arg5[%c1_38, %c0_39, %c0_40] : memref<2x3x128xf32, #tpu.memory_space<vmem>>, vector<1x1x128xf32>
    %71 = vector.shape_cast %70 : vector<1x1x128xf32> to vector<1x128xf32>
    %72 = vector.broadcast %71 : vector<1x128xf32> to vector<16x128xf32>
    %73 = arith.addf %69, %72 : vector<16x128xf32>
    %cst_41 = arith.constant 0.000000e+00 : f32
    %74 = vector.broadcast %cst_41 : f32 to vector<16x128xf32>
    %75 = arith.maximumf %73, %74 : vector<16x128xf32>
    %c0_42 = arith.constant 0 : index
    %c0_43 = arith.constant 0 : index
    %76 = vector.load %arg6[%c0_42, %c0_43] : memref<128x16xf32, #tpu.memory_space<vmem>>, vector<128x16xf32>
    %cst_44 = arith.constant dense<0.000000e+00> : vector<16x16xf32>
    %77 = tpu.matmul %75, %76, %cst_44 {dimension_numbers = #tpu.dot_dimension_numbers<[1], [0], [0], [1], [0, 0, 1, 1], [], []>} : vector<16x128xf32>, vector<128x16xf32>, vector<16x16xf32> -> vector<16x16xf32>
    %c0_45 = arith.constant 0 : index
    %c0_46 = arith.constant 0 : index
    %78 = vector.load %arg7[%c0_45, %c0_46] : memref<1x16xf32, #tpu.memory_space<vmem>>, vector<1x16xf32>
    %79 = vector.broadcast %78 : vector<1x16xf32> to vector<16x16xf32>
    %80 = arith.addf %77, %79 : vector<16x16xf32>
    %c0_47 = arith.constant 0 : index
    %c0_48 = arith.constant 0 : index
    %81 = vector.load %arg8[%c0_47, %c0_48] : memref<16x16xf32, #tpu.memory_space<vmem>>, vector<16x16xf32>
    tpu.vector_store %arg8[%c0_47, %c0_48], %80 {strides = array<i32>} : memref<16x16xf32, #tpu.memory_space<vmem>>, vector<16x16xf32>,
    return
  }
  func.func @transform_0(%arg0: i32) -> (i32, i32) {
    %c0_i32 = arith.constant 0 : i32
    %c0_i32_0 = arith.constant 0 : i32
    return %arg0, %c0_i32 : i32, i32
  }
  func.func @transform_1(%arg0: i32) -> (i32, i32) {
    %c0_i32 = arith.constant 0 : i32
    %c0_i32_0 = arith.constant 0 : i32
    %c0_i32_1 = arith.constant 0 : i32
    return %c0_i32, %c0_i32_0 : i32, i32
  }
  func.func @transform_2(%arg0: i32) -> (i32, i32) {
    %c0_i32 = arith.constant 0 : i32
    %c0_i32_0 = arith.constant 0 : i32
    %c0_i32_1 = arith.constant 0 : i32
    return %c0_i32, %c0_i32_0 : i32, i32
  }
  func.func @transform_3(%arg0: i32) -> (i32, i32, i32) {
    %c0_i32 = arith.constant 0 : i32
    %c0_i32_0 = arith.constant 0 : i32
    %c0_i32_1 = arith.constant 0 : i32
    %c0_i32_2 = arith.constant 0 : i32
    return %c0_i32, %c0_i32_0, %c0_i32_1 : i32, i32, i32
  }
  func.func @transform_4(%arg0: i32) -> (i32, i32, i32) {
    %c0_i32 = arith.constant 0 : i32
    %c0_i32_0 = arith.constant 0 : i32
    %c0_i32_1 = arith.constant 0 : i32
    %c0_i32_2 = arith.constant 0 : i32
    return %c0_i32, %c0_i32_0, %c0_i32_1 : i32, i32, i32
  }
  func.func @transform_5(%arg0: i32) -> (i32, i32) {
    %c0_i32 = arith.constant 0 : i32
    %c0_i32_0 = arith.constant 0 : i32
    %c0_i32_1 = arith.constant 0 : i32
    return %c0_i32, %c0_i32_0 : i32, i32
  }
  func.func @transform_6(%arg0: i32) -> (i32, i32) {
    %c0_i32 = arith.constant 0 : i32
    %c0_i32_0 = arith.constant 0 : i32
    %c0_i32_1 = arith.constant 0 : i32
    return %c0_i32, %c0_i32_0 : i32, i32
  }
  func.func @transform_7(%arg0: i32) -> (i32, i32) {
    %c0_i32 = arith.constant 0 : i32
    %c0_i32_0 = arith.constant 0 : i32
    return %arg0, %c0_i32 : i32, i32
  }
}

</mosaic_0001>

<llo_original>
// kernel: residual_mlp_forward.1
$region0: #{residual_mlp_forward.1}
  #allocation0 [shape = 'u32[]', space=smem, size = 0x4, offset = 0x4, fixed_abs, tag = 'smem constant byte address 0x4 - core index']
  #allocation1 [shape = 'u32[144,128]{1,0:T(1,128)}', space=vmem, size = 0x12000, scoped, tag = 'internal scratch']
  %s0 = inlined_call_operand.vmem [shape: f32[16,24], index: 0, kind: input, shape index: {}]
  %s1 = inlined_call_operand.vmem [shape: f32[24,128], index: 1, kind: input, shape index: {}]
  %s2 = inlined_call_operand.vmem [shape: f32[1,128], index: 2, kind: input, shape index: {}]
  %s3 = inlined_call_operand.vmem [shape: f32[2,128,128], index: 3, kind: input, shape index: {}]
  %s4 = inlined_call_operand.vmem [shape: f32[2,3,128], index: 4, kind: input, shape index: {}]
  %s5 = inlined_call_operand.vmem [shape: f32[128,16], index: 5, kind: input, shape index: {}]
  %s6 = inlined_call_operand.vmem [shape: f32[1,16], index: 6, kind: input, shape index: {}]
  %s7 = inlined_call_operand.hbm [shape: f32[16,16], index: 7, kind: output, shape index: {}]
  %s8 = sld [smem:[#allocation0]]
  $region38: #{residual_mlp_forward.1} parent=0
    _
  %s10 = ssub.s32 1, %s8
  %s11 = scalar_select 0, %s10, %s8
  $region1: #{residual_mlp_forward.1} parent=0
    #allocation2 [shape = 'u8[8192]{0}', space=vmem, size = 0x2000, scoped, tag = 'output window, operand 0, single buffered']
    #allocation3 [shape = 's32[1]{0}', space=sflag, size = 0x4, scoped, tag = 'scoped memory for residual_mlp_forward.1']
    %12 = vsyncpa [#allocation3], 0
    // Predicated region
    $region2: #{residual_mlp_forward.1} parent=1 // pred_check
      _
    $region3: #{residual_mlp_forward.1} parent=1 // pred_check_branch
      %14 = sbr.rel (0) target = $region5
    $region4: #{residual_mlp_forward.1} parent=1 // pred_region
      _
    $region5: #{residual_mlp_forward.1} parent=1 // pred_fallthru
      _
    // Predicated region
    $region6: #{residual_mlp_forward.1} parent=1 // pred_check
      _
    $region7: #{residual_mlp_forward.1} parent=1 // pred_check_branch
      %16 = sbr.rel (0) target = $region9
    $region8: #{residual_mlp_forward.1} parent=1 // pred_region
      _
    $region9: #{residual_mlp_forward.1} parent=1 // pred_fallthru
      _
    // Predicated region
    $region10: #{residual_mlp_forward.1} parent=1 // pred_check
      _
    $region11: #{residual_mlp_forward.1} parent=1 // pred_check_branch
      %18 = sbr.rel (0) target = $region13
    $region12: #{residual_mlp_forward.1} parent=1 // pred_region
      _
    $region13: #{residual_mlp_forward.1} parent=1 // pred_fallthru
      _
    // Predicated region
    $region14: #{residual_mlp_forward.1} parent=1 // pred_check
      _
    $region15: #{residual_mlp_forward.1} parent=1 // pred_check_branch
      %20 = sbr.rel (0) target = $region17
    $region16: #{residual_mlp_forward.1} parent=1 // pred_region
      _
    $region17: #{residual_mlp_forward.1} parent=1 // pred_fallthru
      _
    // Predicated region
    $region18: #{residual_mlp_forward.1} parent=1 // pred_check
      _
    $region19: #{residual_mlp_forward.1} parent=1 // pred_check_branch
      %22 = sbr.rel (0) target = $region21
    $region20: #{residual_mlp_forward.1} parent=1 // pred_region
      _
    $region21: #{residual_mlp_forward.1} parent=1 // pred_fallthru
      _
    // Predicated region
    $region22: #{residual_mlp_forward.1} parent=1 // pred_check
      _
    $region23: #{residual_mlp_forward.1} parent=1 // pred_check_branch
      %24 = sbr.rel (0) target = $region25
    $region24: #{residual_mlp_forward.1} parent=1 // pred_region
      _
    $region25: #{residual_mlp_forward.1} parent=1 // pred_fallthru
      _
    // Predicated region
    $region26: #{residual_mlp_forward.1} parent=1 // pred_check
      _
    $region27: #{residual_mlp_forward.1} parent=1 // pred_check_branch
      %26 = sbr.rel (0) target = $region29
    $region28: #{residual_mlp_forward.1} parent=1 // pred_region
      _
    $region29: #{residual_mlp_forward.1} parent=1 // pred_fallthru
      _
    %v27 = vld [vmem:[%s0] sm:$0xff]
    %v28 = vld [vmem:[%s0 + $0x8] sm:$0xff]
    %v29 = vld [vmem:[%s1] sm:$0xff]
    %v30 = vld [vmem:[%s1 + $0x8] sm:$0xff]
    %v31 = vld [vmem:[%s1 + $0x10] sm:$0xff]
    %v32 = vld [vmem:[%s2] sm:$0x1]
    %v34 = vlaneseq
    %v35 = vshrl.u32 %v34, 7
    %v36 = vsub.s32 0, %v35
    %v37 = vrot.slane %v32, %v36
    %vm39 = vcmask 195584
    %v41 = vsel %vm39, %v27, 0
    %v44 = vsel %vm39, %v28, 0
    %46 = vmatprep.subr.mxu0 0.0
    %47 = vmatpush1.msra.mxu0 %v29
    %48 = vmatprep.subr.mxu0 0.0
    %49 = vmatpush1.msra.mxu0 %v30
    %50 = vmatprep.subr.mxu0 0.0
    %51 = vmatpush1.msra.mxu0 %v31
    %52 = vmatprep.subr.mxu0 0.0
    %53 = vmatpush1.msra.mxu0 0.0
    %54 = vmatprep.subr.mxu0 0.0
    %55 = vmatpush1.msra.mxu0 0.0
    %56 = vmatprep.subr.mxu0 0.0
    %57 = vmatpush1.msra.mxu0 0.0
    %58 = vmatprep.subr.mxu0 0.0
    %59 = vmatpush1.msra.mxu0 0.0
    %60 = vmatprep.subr.mxu0 0.0
    %61 = vmatpush1.msra.mxu0 0.0
    %62 = vmatprep.subr.mxu0 0.0
    %63 = vmatpush1.msra.mxu0 0.0
    %64 = vmatprep.subr.mxu0 0.0
    %65 = vmatpush1.msra.mxu0 0.0
    %66 = vmatprep.subr.mxu0 0.0
    %67 = vmatpush1.msra.mxu0 0.0
    %68 = vmatprep.subr.mxu0 0.0
    %69 = vmatpush1.msra.mxu0 0.0
    %70 = vmatprep.subr.mxu0 0.0
    %71 = vmatpush1.msra.mxu0 0.0
    %72 = vmatprep.subr.mxu0 0.0
    %73 = vmatpush1.msra.mxu0 0.0
    %74 = vmatprep.subr.mxu0 0.0
    %75 = vmatpush1.msra.mxu0 0.0
    %76 = vmatprep.subr.mxu0 0.0
    %77 = vmatpush1.msra.mxu0 0.0
    %78 = vmatprep.subr.mxu0 0.0
    %79 = vmatpush1.msra.mxu0 0.0
    %80 = vmatprep.subr.mxu0 0.0
    %81 = vmatpush1.msra.mxu0 0.0
    %82 = vmatprep.subr.mxu0 0.0
    %83 = vmatpush1.msra.mxu0 0.0
    %84 = vmatprep.subr.mxu0 0.0
    %85 = vmatpush1.msra.mxu0 0.0
    %86 = vmatprep.subr.mxu0 0.0
    %87 = vmatpush1.msra.mxu0 0.0
    %88 = vmatprep.subr.mxu0 0.0
    %89 = vmatpush1.msra.mxu0 0.0
    %90 = vmatprep.subr.mxu0 0.0
    %91 = vmatpush1.msra.mxu0 0.0
    %92 = vmatprep.subr.mxu0 0.0
    %93 = vmatpush1.msra.mxu0 0.0
    %94 = vmatprep.subr.mxu0 0.0
    %95 = vmatpush1.msra.mxu0 0.0
    %96 = vmatprep.subr.mxu0 0.0
    %97 = vmatpush1.msra.mxu0 0.0
    %98 = vmatprep.subr.mxu0 0.0
    %99 = vmatpush1.msra.mxu0 0.0
    %100 = vmatprep.subr.mxu0 0.0
    %101 = vmatpush1.msra.mxu0 0.0
    %102 = vmatprep.subr.mxu0 0.0
    %103 = vmatpush1.msra.mxu0 0.0
    %104 = vmatprep.subr.mxu0 0.0
    %105 = vmatpush1.msra.mxu0 0.0
    %106 = vmatprep.subr.mxu0 0.0
    %107 = vmatpush1.msra.mxu0 0.0
    %108 = vmatprep.subr.mxu0 0.0
    %109 = vmatpush1.msra.mxu0 0.0
    %110 = vmatprep.mubr.f32.mxu0 0.0
    %111 = vmatmul.mubr.f32.gmra.mrb[0].mxu0 %v41
    %v112 = vpop.f32.mrb[0].mxu0
    %v113 = vadd.f32 %v37, %v112
    %v114 = vpop.f32.mrb[0].mxu0
    %115 = vmatprep.mubr.f32.mxu0 0.0
    %116 = vmatmul.mubr.f32.gmra.mrb[0].mxu0 %v44
    %v117 = vpop.f32.mrb[0].mxu0
    %v118 = vadd.f32 %v37, %v117
    %v119 = vpop.f32.mrb[0].mxu0
    %120 = vdwg.mxu0
    %v121 = vld [vmem:[%s4 + $0x1] sm:$0x1]
    %v122 = vld [vmem:[%s4 + $0x2] sm:$0x1]
    %123 = vadd.xlane.f32.xlu0 %v113
    %v124 = vpop.xlane.xlu0 %123
    %125 = vadd.xlane.f32.xlu0 %v118
    %v126 = vpop.xlane.xlu0 %125
    %v127 = vrcp.pop 128.0
    %v128 = vmul.f32 %v124, %v127
    %v129 = vmul.f32 %v126, %v127
    %v130 = vsub.f32 %v113, %v128
    %v131 = vsub.f32 %v118, %v129
    %v132 = vmul.f32 %v130, %v130
    %v133 = vmul.f32 %v131, %v131
    %134 = vadd.xlane.f32.xlu0 %v132
    %v135 = vpop.xlane.xlu0 %134
    %136 = vadd.xlane.f32.xlu0 %v133
    %v137 = vpop.xlane.xlu0 %136
    %v138 = vmul.f32 %v135, %v127
    %v139 = vmul.f32 %v137, %v127
    %v140 = vadd.f32 %v138, 1e-05
    %v141 = vadd.f32 %v139, 1e-05
    %v142 = vrsqrt.pop %v140
    %v143 = vrsqrt.pop %v141
    %v144 = vmul.f32 %v130, %v142
    %v145 = vmul.f32 %v131, %v143
    %v146 = vlaneseq
    %v147 = vshrl.u32 %v146, 7
    %v148 = vsub.s32 0, %v147
    %v149 = vrot.slane %v121, %v148
    %v150 = vmul.f32 %v144, %v149
    %v151 = vmul.f32 %v145, %v149
    %v152 = vlaneseq
    %v153 = vshrl.u32 %v152, 7
    %v154 = vsub.s32 0, %v153
    %v155 = vrot.slane %v122, %v154
    %v156 = vadd.f32 %v150, %v155
    %v157 = vadd.f32 %v151, %v155
    %v158 = vmax.f32 %v156, 0.0
    %v159 = vmax.f32 %v157, 0.0
    %v160 = vld [vmem:[%s3] sm:$0xff]
    %v161 = vld [vmem:[%s3 + $0x8] sm:$0xff]
    %v162 = vld [vmem:[%s3 + $0x10] sm:$0xff]
    %v163 = vld [vmem:[%s3 + $0x18] sm:$0xff]
    %v164 = vld [vmem:[%s3 + $0x20] sm:$0xff]
    %v165 = vld [vmem:[%s3 + $0x28] sm:$0xff]
    %v166 = vld [vmem:[%s3 + $0x30] sm:$0xff]
    %v167 = vld [vmem:[%s3 + $0x38] sm:$0xff]
    %v168 = vld [vmem:[%s3 + $0x40] sm:$0xff]
    %v169 = vld [vmem:[%s3 + $0x48] sm:$0xff]
    %v170 = vld [vmem:[%s3 + $0x50] sm:$0xff]
    %v171 = vld [vmem:[%s3 + $0x58] sm:$0xff]
    %v172 = vld [vmem:[%s3 + $0x60] sm:$0xff]
    %v173 = vld [vmem:[%s3 + $0x68] sm:$0xff]
    %v174 = vld [vmem:[%s3 + $0x70] sm:$0xff]
    %v175 = vld [vmem:[%s3 + $0x78] sm:$0xff]
    %176 = vmatprep.subr.mxu0 0.0
    %177 = vmatpush1.msra.mxu0 %v160
    %178 = vmatprep.subr.mxu0 0.0
    %179 = vmatpush1.msra.mxu0 %v161
    %180 = vmatprep.subr.mxu0 0.0
    %181 = vmatpush1.msra.mxu0 %v162
    %182 = vmatprep.subr.mxu0 0.0
    %183 = vmatpush1.msra.mxu0 %v163
    %184 = vmatprep.subr.mxu0 0.0
    %185 = vmatpush1.msra.mxu0 %v164
    %186 = vmatprep.subr.mxu0 0.0
    %187 = vmatpush1.msra.mxu0 %v165
    %188 = vmatprep.subr.mxu0 0.0
    %189 = vmatpush1.msra.mxu0 %v166
    %190 = vmatprep.subr.mxu0 0.0
    %191 = vmatpush1.msra.mxu0 %v167
    %192 = vmatprep.subr.mxu0 0.0
    %193 = vmatpush1.msra.mxu0 %v168
    %194 = vmatprep.subr.mxu0 0.0
    %195 = vmatpush1.msra.mxu0 %v169
    %196 = vmatprep.subr.mxu0 0.0
    %197 = vmatpush1.msra.mxu0 %v170
    %198 = vmatprep.subr.mxu0 0.0
    %199 = vmatpush1.msra.mxu0 %v171
    %200 = vmatprep.subr.mxu0 0.0
    %201 = vmatpush1.msra.mxu0 %v172
    %202 = vmatprep.subr.mxu0 0.0
    %203 = vmatpush1.msra.mxu0 %v173
    %204 = vmatprep.subr.mxu0 0.0
    %205 = vmatpush1.msra.mxu0 %v174
    %206 = vmatprep.subr.mxu0 0.0
    %207 = vmatpush1.msra.mxu0 %v175
    %208 = vmatprep.subr.mxu0 0.0
    %209 = vmatpush1.msra.mxu0 0.0
    %210 = vmatprep.subr.mxu0 0.0
    %211 = vmatpush1.msra.mxu0 0.0
    %212 = vmatprep.subr.mxu0 0.0
    %213 = vmatpush1.msra.mxu0 0.0
    %214 = vmatprep.subr.mxu0 0.0
    %215 = vmatpush1.msra.mxu0 0.0
    %216 = vmatprep.subr.mxu0 0.0
    %217 = vmatpush1.msra.mxu0 0.0
    %218 = vmatprep.subr.mxu0 0.0
    %219 = vmatpush1.msra.mxu0 0.0
    %220 = vmatprep.subr.mxu0 0.0
    %221 = vmatpush1.msra.mxu0 0.0
    %222 = vmatprep.subr.mxu0 0.0
    %223 = vmatpush1.msra.mxu0 0.0
    %224 = vmatprep.subr.mxu0 0.0
    %225 = vmatpush1.msra.mxu0 0.0
    %226 = vmatprep.subr.mxu0 0.0
    %227 = vmatpush1.msra.mxu0 0.0
    %228 = vmatprep.subr.mxu0 0.0
    %229 = vmatpush1.msra.mxu0 0.0
    %230 = vmatprep.subr.mxu0 0.0
    %231 = vmatpush1.msra.mxu0 0.0
    %232 = vmatprep.subr.mxu0 0.0
    %233 = vmatpush1.msra.mxu0 0.0
    %234 = vmatprep.subr.mxu0 0.0
    %235 = vmatpush1.msra.mxu0 0.0
    %236 = vmatprep.subr.mxu0 0.0
    %237 = vmatpush1.msra.mxu0 0.0
    %238 = vmatprep.subr.mxu0 0.0
    %239 = vmatpush1.msra.mxu0 0.0
    %240 = vmatprep.mubr.f32.mxu0 0.0
    %241 = vmatmul.mubr.f32.gmra.mrb[0].mxu0 %v158
    %v242 = vpop.f32.mrb[0].mxu0
    %v243 = vadd.f32 0.0, %v242
    %v244 = vpop.f32.mrb[0].mxu0
    %245 = vmatprep.mubr.f32.mxu0 0.0
    %246 = vmatmul.mubr.f32.gmra.mrb[0].mxu0 %v159
    %v247 = vpop.f32.mrb[0].mxu0
    %v248 = vadd.f32 0.0, %v247
    %v249 = vpop.f32.mrb[0].mxu0
    %250 = vdwg.mxu0
    %v251 = vadd.f32 %v113, %v243
    %v252 = vadd.f32 %v118, %v248
    %v253 = vld [vmem:[%s4] sm:$0x1]
    %v254 = vlaneseq
    %v255 = vshrl.u32 %v254, 7
    %v256 = vsub.s32 0, %v255
    %v257 = vrot.slane %v253, %v256
    %v258 = vadd.f32 %v251, %v257
    %v259 = vadd.f32 %v252, %v257
    %s260 = scalar_lea.vmem %s4, 4
    %v261 = vld [vmem:[%s260 + $0x1] sm:$0x1]
    %v262 = vld [vmem:[%s260 + $0x2] sm:$0x1]
    %263 = vadd.xlane.f32.xlu0 %v258
    %v264 = vpop.xlane.xlu0 %263
    %265 = vadd.xlane.f32.xlu0 %v259
    %v266 = vpop.xlane.xlu0 %265
    %v267 = vmul.f32 %v264, %v127
    %v268 = vmul.f32 %v266, %v127
    %v269 = vsub.f32 %v258, %v267
    %v270 = vsub.f32 %v259, %v268
    %v271 = vmul.f32 %v269, %v269
    %v272 = vmul.f32 %v270, %v270
    %273 = vadd.xlane.f32.xlu0 %v271
    %v274 = vpop.xlane.xlu0 %273
    %275 = vadd.xlane.f32.xlu0 %v272
    %v276 = vpop.xlane.xlu0 %275
    %v277 = vmul.f32 %v274, %v127
    %v278 = vmul.f32 %v276, %v127
    %v279 = vadd.f32 %v277, 1e-05
    %v280 = vadd.f32 %v278, 1e-05
    %v281 = vrsqrt.pop %v279
    %v282 = vrsqrt.pop %v280
    %v283 = vmul.f32 %v269, %v281
    %v284 = vmul.f32 %v270, %v282
    %v285 = vlaneseq
    %v286 = vshrl.u32 %v285, 7
    %v287 = vsub.s32 0, %v286
    %v288 = vrot.slane %v261, %v287
    %v289 = vmul.f32 %v283, %v288
    %v290 = vmul.f32 %v284, %v288
    %v291 = vlaneseq
    %v292 = vshrl.u32 %v291, 7
    %v293 = vsub.s32 0, %v292
    %v294 = vrot.slane %v262, %v293
    %v295 = vadd.f32 %v289, %v294
    %v296 = vadd.f32 %v290, %v294
    %v297 = vmax.f32 %v295, 0.0
    %v298 = vmax.f32 %v296, 0.0
    %s299 = scalar_lea.vmem %s3, 128
    %v300 = vld [vmem:[%s299] sm:$0xff]
    %v301 = vld [vmem:[%s299 + $0x8] sm:$0xff]
    %v302 = vld [vmem:[%s299 + $0x10] sm:$0xff]
    %v303 = vld [vmem:[%s299 + $0x18] sm:$0xff]
    %v304 = vld [vmem:[%s299 + $0x20] sm:$0xff]
    %v305 = vld [vmem:[%s299 + $0x28] sm:$0xff]
    %v306 = vld [vmem:[%s299 + $0x30] sm:$0xff]
    %v307 = vld [vmem:[%s299 + $0x38] sm:$0xff]
    %v308 = vld [vmem:[%s299 + $0x40] sm:$0xff]
    %v309 = vld [vmem:[%s299 + $0x48] sm:$0xff]
    %v310 = vld [vmem:[%s299 + $0x50] sm:$0xff]
    %v311 = vld [vmem:[%s299 + $0x58] sm:$0xff]
    %v312 = vld [vmem:[%s299 + $0x60] sm:$0xff]
    %v313 = vld [vmem:[%s299 + $0x68] sm:$0xff]
    %v314 = vld [vmem:[%s299 + $0x70] sm:$0xff]
    %v315 = vld [vmem:[%s299 + $0x78] sm:$0xff]
    %316 = vmatprep.subr.mxu0 0.0
    %317 = vmatpush1.msra.mxu0 %v300
    %318 = vmatprep.subr.mxu0 0.0
    %319 = vmatpush1.msra.mxu0 %v301
    %320 = vmatprep.subr.mxu0 0.0
    %321 = vmatpush1.msra.mxu0 %v302
    %322 = vmatprep.subr.mxu0 0.0
    %323 = vmatpush1.msra.mxu0 %v303
    %324 = vmatprep.subr.mxu0 0.0
    %325 = vmatpush1.msra.mxu0 %v304
    %326 = vmatprep.subr.mxu0 0.0
    %327 = vmatpush1.msra.mxu0 %v305
    %328 = vmatprep.subr.mxu0 0.0
    %329 = vmatpush1.msra.mxu0 %v306
    %330 = vmatprep.subr.mxu0 0.0
    %331 = vmatpush1.msra.mxu0 %v307
    %332 = vmatprep.subr.mxu0 0.0
    %333 = vmatpush1.msra.mxu0 %v308
    %334 = vmatprep.subr.mxu0 0.0
    %335 = vmatpush1.msra.mxu0 %v309
    %336 = vmatprep.subr.mxu0 0.0
    %337 = vmatpush1.msra.mxu0 %v310
    %338 = vmatprep.subr.mxu0 0.0
    %339 = vmatpush1.msra.mxu0 %v311
    %340 = vmatprep.subr.mxu0 0.0
    %341 = vmatpush1.msra.mxu0 %v312
    %342 = vmatprep.subr.mxu0 0.0
    %343 = vmatpush1.msra.mxu0 %v313
    %344 = vmatprep.subr.mxu0 0.0
    %345 = vmatpush1.msra.mxu0 %v314
    %346 = vmatprep.subr.mxu0 0.0
    %347 = vmatpush1.msra.mxu0 %v315
    %348 = vmatprep.subr.mxu0 0.0
    %349 = vmatpush1.msra.mxu0 0.0
    %350 = vmatprep.subr.mxu0 0.0
    %351 = vmatpush1.msra.mxu0 0.0
    %352 = vmatprep.subr.mxu0 0.0
    %353 = vmatpush1.msra.mxu0 0.0
    %354 = vmatprep.subr.mxu0 0.0
    %355 = vmatpush1.msra.mxu0 0.0
    %356 = vmatprep.subr.mxu0 0.0
    %357 = vmatpush1.msra.mxu0 0.0
    %358 = vmatprep.subr.mxu0 0.0
    %359 = vmatpush1.msra.mxu0 0.0
    %360 = vmatprep.subr.mxu0 0.0
    %361 = vmatpush1.msra.mxu0 0.0
    %362 = vmatprep.subr.mxu0 0.0
    %363 = vmatpush1.msra.mxu0 0.0
    %364 = vmatprep.subr.mxu0 0.0
    %365 = vmatpush1.msra.mxu0 0.0
    %366 = vmatprep.subr.mxu0 0.0
    %367 = vmatpush1.msra.mxu0 0.0
    %368 = vmatprep.subr.mxu0 0.0
    %369 = vmatpush1.msra.mxu0 0.0
    %370 = vmatprep.subr.mxu0 0.0
    %371 = vmatpush1.msra.mxu0 0.0
    %372 = vmatprep.subr.mxu0 0.0
    %373 = vmatpush1.msra.mxu0 0.0
    %374 = vmatprep.subr.mxu0 0.0
    %375 = vmatpush1.msra.mxu0 0.0
    %376 = vmatprep.subr.mxu0 0.0
    %377 = vmatpush1.msra.mxu0 0.0
    %378 = vmatprep.subr.mxu0 0.0
    %379 = vmatpush1.msra.mxu0 0.0
    %380 = vmatprep.mubr.f32.mxu0 0.0
    %381 = vmatmul.mubr.f32.gmra.mrb[0].mxu0 %v297
    %v382 = vpop.f32.mrb[0].mxu0
    %v383 = vadd.f32 0.0, %v382
    %v384 = vpop.f32.mrb[0].mxu0
    %385 = vmatprep.mubr.f32.mxu0 0.0
    %386 = vmatmul.mubr.f32.gmra.mrb[0].mxu0 %v298
    %v387 = vpop.f32.mrb[0].mxu0
    %v388 = vadd.f32 0.0, %v387
    %v389 = vpop.f32.mrb[0].mxu0
    %390 = vdwg.mxu0
    %v391 = vadd.f32 %v258, %v383
    %v392 = vadd.f32 %v259, %v388
    %v393 = vld [vmem:[%s260] sm:$0x1]
    %v394 = vlaneseq
    %v395 = vshrl.u32 %v394, 7
    %v396 = vsub.s32 0, %v395
    %v397 = vrot.slane %v393, %v396
    %v398 = vadd.f32 %v391, %v397
    %v399 = vadd.f32 %v392, %v397
    %v400 = vmax.f32 %v398, 0.0
    %v401 = vmax.f32 %v399, 0.0
    %v402 = vld [vmem:[%s5] sm:$0xff]
    %v403 = vld [vmem:[%s5 + $0x8] sm:$0xff]
    %v404 = vld [vmem:[%s5 + $0x10] sm:$0xff]
    %v405 = vld [vmem:[%s5 + $0x18] sm:$0xff]
    %v406 = vld [vmem:[%s5 + $0x20] sm:$0xff]
    %v407 = vld [vmem:[%s5 + $0x28] sm:$0xff]
    %v408 = vld [vmem:[%s5 + $0x30] sm:$0xff]
    %v409 = vld [vmem:[%s5 + $0x38] sm:$0xff]
    %v410 = vld [vmem:[%s5 + $0x40] sm:$0xff]
    %v411 = vld [vmem:[%s5 + $0x48] sm:$0xff]
    %v412 = vld [vmem:[%s5 + $0x50] sm:$0xff]
    %v413 = vld [vmem:[%s5 + $0x58] sm:$0xff]
    %v414 = vld [vmem:[%s5 + $0x60] sm:$0xff]
    %v415 = vld [vmem:[%s5 + $0x68] sm:$0xff]
    %v416 = vld [vmem:[%s5 + $0x70] sm:$0xff]
    %v417 = vld [vmem:[%s5 + $0x78] sm:$0xff]
    %v418 = vld [vmem:[%s6] sm:$0x1]
    %v420 = vlaneseq
    %v421 = vshrl.u32 %v420, 7
    %v422 = vsub.s32 0, %v421
    %v423 = vrot.slane %v418, %v422
    %425 = vmatprep.subr.mxu0 0.0
    %426 = vmatpush1.msra.mxu0 %v402
    %427 = vmatprep.subr.mxu0 0.0
    %428 = vmatpush1.msra.mxu0 %v403
    %429 = vmatprep.subr.mxu0 0.0
    %430 = vmatpush1.msra.mxu0 %v404
    %431 = vmatprep.subr.mxu0 0.0
    %432 = vmatpush1.msra.mxu0 %v405
    %433 = vmatprep.subr.mxu0 0.0
    %434 = vmatpush1.msra.mxu0 %v406
    %435 = vmatprep.subr.mxu0 0.0
    %436 = vmatpush1.msra.mxu0 %v407
    %437 = vmatprep.subr.mxu0 0.0
    %438 = vmatpush1.msra.mxu0 %v408
    %439 = vmatprep.subr.mxu0 0.0
    %440 = vmatpush1.msra.mxu0 %v409
    %441 = vmatprep.subr.mxu0 0.0
    %442 = vmatpush1.msra.mxu0 %v410
    %443 = vmatprep.subr.mxu0 0.0
    %444 = vmatpush1.msra.mxu0 %v411
    %445 = vmatprep.subr.mxu0 0.0
    %446 = vmatpush1.msra.mxu0 %v412
    %447 = vmatprep.subr.mxu0 0.0
    %448 = vmatpush1.msra.mxu0 %v413
    %449 = vmatprep.subr.mxu0 0.0
    %450 = vmatpush1.msra.mxu0 %v414
    %451 = vmatprep.subr.mxu0 0.0
    %452 = vmatpush1.msra.mxu0 %v415
    %453 = vmatprep.subr.mxu0 0.0
    %454 = vmatpush1.msra.mxu0 %v416
    %455 = vmatprep.subr.mxu0 0.0
    %456 = vmatpush1.msra.mxu0 %v417
    %457 = vmatprep.subr.mxu0 0.0
    %458 = vmatpush1.msra.mxu0 0.0
    %459 = vmatprep.subr.mxu0 0.0
    %460 = vmatpush1.msra.mxu0 0.0
    %461 = vmatprep.subr.mxu0 0.0
    %462 = vmatpush1.msra.mxu0 0.0
    %463 = vmatprep.subr.mxu0 0.0
    %464 = vmatpush1.msra.mxu0 0.0
    %465 = vmatprep.subr.mxu0 0.0
    %466 = vmatpush1.msra.mxu0 0.0
    %467 = vmatprep.subr.mxu0 0.0
    %468 = vmatpush1.msra.mxu0 0.0
    %469 = vmatprep.subr.mxu0 0.0
    %470 = vmatpush1.msra.mxu0 0.0
    %471 = vmatprep.subr.mxu0 0.0
    %472 = vmatpush1.msra.mxu0 0.0
    %473 = vmatprep.subr.mxu0 0.0
    %474 = vmatpush1.msra.mxu0 0.0
    %475 = vmatprep.subr.mxu0 0.0
    %476 = vmatpush1.msra.mxu0 0.0
    %477 = vmatprep.subr.mxu0 0.0
    %478 = vmatpush1.msra.mxu0 0.0
    %479 = vmatprep.subr.mxu0 0.0
    %480 = vmatpush1.msra.mxu0 0.0
    %481 = vmatprep.subr.mxu0 0.0
    %482 = vmatpush1.msra.mxu0 0.0
    %483 = vmatprep.subr.mxu0 0.0
    %484 = vmatpush1.msra.mxu0 0.0
    %485 = vmatprep.subr.mxu0 0.0
    %486 = vmatpush1.msra.mxu0 0.0
    %487 = vmatprep.subr.mxu0 0.0
    %488 = vmatpush1.msra.mxu0 0.0
    %489 = vmatprep.mubr.f32.mxu0 0.0
    %490 = vmatmul.mubr.f32.gmra.mrb[0].mxu0 %v400
    %v491 = vpop.f32.mrb[0].mxu0
    %v492 = vadd.f32 %v423, %v491
    %v493 = vpop.f32.mrb[0].mxu0
    %494 = vmatprep.mubr.f32.mxu0 0.0
    %495 = vmatmul.mubr.f32.gmra.mrb[0].mxu0 %v401
    %v496 = vpop.f32.mrb[0].mxu0
    %v497 = vadd.f32 %v423, %v496
    %v498 = vpop.f32.mrb[0].mxu0
    %499 = vdwg.mxu0
    %vm500 = vcmask 130048
    %501 = vst.msk [vmem:[#allocation2] sm:$0xff] %vm500, %v492
    %502 = vst.msk [vmem:[#allocation2 + $0x8] sm:$0xff] %vm500, %v497
    // Predicated region
    $region30: #{residual_mlp_forward.1} parent=1 // pred_check
      _
    $region31: #{residual_mlp_forward.1} parent=1 // pred_check_branch
      %504 = sbr.rel (0) target = $region33
    $region32: #{residual_mlp_forward.1} parent=1 // pred_region
      %s506 = ssub.s32 256, 256
      %507 = vsyncadd [#allocation3], %s506
      %s508 = sshll.u32 [#allocation2], 4
      %s509 = int_to_ptr.vmem [resolvable:$true] %s508
      %514 = dma.vmem_to_hbm [thread:$0]  %s509, 256, %s7, [#allocation3], 128, 128, 8
    $region33: #{residual_mlp_forward.1} parent=1 // pred_fallthru
      _
    // Predicated region
    $region34: #{residual_mlp_forward.1} parent=1 // pred_check
      _
    $region35: #{residual_mlp_forward.1} parent=1 // pred_check_branch
      %516 = sbr.rel (0) target = $region37
    $region36: #{residual_mlp_forward.1} parent=1 // pred_region
      %517 = dma.done [#allocation3], 256
    $region37: #{residual_mlp_forward.1} parent=1 // pred_fallthru
      _
    %518 = vsyncpa [#allocation3], 1

</llo_original>
